<compile_context>
chip_gen: v7x
topology: tpu7x:2x2x1
jax: 0.10.0
libtpu: 0.0.40
codegen_flags: <defaults>
</compile_context>

<pallas_src>
import functools
import math

import numpy as np
import jax
import jax.numpy as jnp
from jax.experimental import pallas as pl
from jax.experimental.pallas import tpu as pltpu


def _cdiv(a, b):
    return -(-a // b)


# ----------------------------------------------------------------------------
# Host-side (CPU) label building, faithful numpy port of the PyTorch code.
# ----------------------------------------------------------------------------
def bbox_iou_np(boxes1, boxes2, x1y1x2y2=True):
    if x1y1x2y2:
        mx = np.minimum(boxes1[0], boxes2[0])
        Mx = np.maximum(boxes1[2], boxes2[2])
        my = np.minimum(boxes1[1], boxes2[1])
        My = np.maximum(boxes1[3], boxes2[3])
        w1 = boxes1[2] - boxes1[0]
        h1 = boxes1[3] - boxes1[1]
        w2 = boxes2[2] - boxes2[0]
        h2 = boxes2[3] - boxes2[1]
    else:
        mx = np.minimum(boxes1[0] - boxes1[2] / 2.0, boxes2[0] - boxes2[2] / 2.0)
        Mx = np.maximum(boxes1[0] + boxes1[2] / 2.0, boxes2[0] + boxes2[2] / 2.0)
        my = np.minimum(boxes1[1] - boxes1[3] / 2.0, boxes2[1] - boxes2[3] / 2.0)
        My = np.maximum(boxes1[1] + boxes1[3] / 2.0, boxes2[1] + boxes2[3] / 2.0)
        w1, h1 = boxes1[2], boxes1[3]
        w2, h2 = boxes2[2], boxes2[3]
    uw = Mx - mx
    uh = My - my
    cw = w1 + w2 - uw
    ch = h1 + h2 - uh
    mask = (cw <= 0) | (ch <= 0)
    area1 = w1 * h1
    area2 = w2 * h2
    carea = np.where(mask, 0.0, cw * ch)
    uarea = area1 + area2 - carea
    return carea / uarea


def build_label_np(pred_boxes, target, anchors, num_anchors, nH, nW,
                   noobject_scale, object_scale, sil_thresh, seen=15000):
    nB = target.shape[0]
    nA = num_anchors
    anchor_step = int(len(anchors) / num_anchors)
    shp = (nB, nA, nH, nW)
    conf_mask = np.ones(shp, np.float32) * noobject_scale
    coord_mask = np.zeros(shp, np.float32)
    cls_mask = np.zeros(shp, np.float32)
    tx = np.zeros(shp, np.float32)
    ty = np.zeros(shp, np.float32)
    tw = np.zeros(shp, np.float32)
    th = np.zeros(shp, np.float32)
    tconf = np.zeros(shp, np.float32)
    tcls = np.zeros(shp, np.float32)
    lr_mask = np.zeros(shp, np.float32)
    tconf_lr = np.zeros(shp, np.float32)
    nAnchors = nA * nH * nW
    nPixels = nH * nW
    for b in range(nB):
        cur_pred_boxes = pred_boxes[b * nAnchors:(b + 1) * nAnchors].T  # (4, nAnchors)
        cur_ious = np.zeros(nAnchors, np.float32)
        for t in range(50):
            if target[b][t * 6 + 1] == 0:
                break
            gx = target[b][t * 6 + 1] * nW
            gy = target[b][t * 6 + 2] * nH
            gw = target[b][t * 6 + 3] * nW
            gh = target[b][t * 6 + 4] * nH
            cur_gt = np.tile(np.array([gx, gy, gw, gh], np.float32), (nAnchors, 1)).T
            cur_ious = np.maximum(cur_ious,
                                  bbox_iou_np(cur_pred_boxes, cur_gt, x1y1x2y2=False))
        cur_ious = cur_ious.reshape(nA, nH, nW)
        conf_mask[b][cur_ious > sil_thresh] = 0
    if seen < 12800:
        tx.fill(0.5)
        ty.fill(0.5)
        tw.fill(0.0)
        th.fill(0.0)
        coord_mask.fill(1.0)
    nGT = 0
    nCorrect = 0
    for b in range(nB):
        for t in range(50):
            if target[b][t * 6 + 1] == 0:
                break
            nGT += 1
            best_iou = 0.0
            best_n = -1
            gx = target[b][t * 6 + 1] * nW
            gy = target[b][t * 6 + 2] * nH
            gi = int(gx)
            gj = int(gy)
            gw = target[b][t * 6 + 3] * nW
            gh = target[b][t * 6 + 4] * nH
            gt_box = np.array([0.0, 0.0, gw, gh], np.float32)
            for n in range(nA):
                aw = anchors[anchor_step * n]
                ah = anchors[anchor_step * n + 1]
                anchor_box = np.array([0.0, 0.0, aw, ah], np.float32)
                iou = bbox_iou_np(anchor_box, gt_box, x1y1x2y2=False)
                if iou > best_iou:
                    best_iou = iou
                    best_n = n
            gt_box = np.array([gx, gy, gw, gh], np.float32)
            pred_box = pred_boxes[b * nAnchors + best_n * nPixels + gj * nW + gi]
            coord_mask[b, best_n, gj, gi] = 1
            cls_mask[b, best_n, gj, gi] = 1
            conf_mask[b, best_n, gj, gi] = object_scale
            tx[b, best_n, gj, gi] = target[b][t * 6 + 1] * nW - gi
            ty[b, best_n, gj, gi] = target[b][t * 6 + 2] * nH - gj
            tw[b, best_n, gj, gi] = math.log(gw / anchors[anchor_step * best_n])
            th[b, best_n, gj, gi] = math.log(gh / anchors[anchor_step * best_n + 1])
            iou = bbox_iou_np(gt_box, pred_box, x1y1x2y2=False)
            tconf[b, best_n, gj, gi] = iou
            lr_mask[b, best_n, gj, gi] = 1
            tconf_lr[b, best_n, gj, gi] = target[b][t * 6 + 5]
            tcls[b, best_n, gj, gi] = target[b][t * 6]
            if iou > 0.5:
                nCorrect += 1
    return (nGT, nCorrect, coord_mask, conf_mask, cls_mask, tx, ty, tw, th,
            tconf, tcls, lr_mask, tconf_lr)


# ----------------------------------------------------------------------------
# Pallas kernels
# ----------------------------------------------------------------------------
def _sigmoid(x):
    # sigmoid(x) == 0.5 * (tanh(x/2) + 1): one EUP op instead of exp + recip.
    return 0.5 * (jnp.tanh(0.5 * x) + 1.0)


def _divmod_exact(x, d):
    """Exact floor-divmod of integer-valued f32 `x` by small positive int `d`.

    The where-corrections make it robust to any rounding of the division as
    long as x, d, and the quotient stay below 2**24 (asserted in the wrapper).
    """
    df = float(d)
    q = jnp.floor(x / df)
    r = x - q * df
    low = r < 0.0
    q = jnp.where(low, q - 1.0, q)
    r = jnp.where(low, r + df, r)
    high = r >= df
    q = jnp.where(high, q + 1.0, q)
    r = jnp.where(high, r - df, r)
    return q, r


def _pred_kernel(c_ref, pb_ref, *, tile_r, n_w, n_h, n_a, anchor_w, anchor_h):
    # c_ref : (4, tile_r, 128) raw [x, y, w, h] channels
    # pb_ref: (4, tile_r, 128) decoded pred boxes [bx, by, bw, bh]
    # Geometry (grid_x, grid_y, anchor_w, anchor_h) is generated in-kernel from
    # the flat (b, a, h, w) index -> no extra HBM planes, no chan8 slab.
    base = pl.program_id(0) * (tile_r * 128)
    row = jax.lax.broadcasted_iota(jnp.int32, (tile_r, 128), 0)
    lane = jax.lax.broadcasted_iota(jnp.int32, (tile_r, 128), 1)
    flat = (base + row * 128 + lane).astype(jnp.float32)

    q, gx = _divmod_exact(flat, n_w)      # grid_x  = w index
    q, gy = _divmod_exact(q, n_h)         # grid_y  = h index
    _, ai = _divmod_exact(q, n_a)         # anchor index

    aw = jnp.zeros_like(ai)
    ah = jnp.zeros_like(ai)
    for n in range(n_a):                  # anchors are static compile-time floats
        sel = ai == float(n)
        aw = jnp.where(sel, float(anchor_w[n]), aw)
        ah = jnp.where(sel, float(anchor_h[n]), ah)

    pb_ref[0] = _sigmoid(c_ref[0]) + gx
    pb_ref[1] = _sigmoid(c_ref[1]) + gy
    pb_ref[2] = jnp.exp(c_ref[2]) * aw
    pb_ref[3] = jnp.exp(c_ref[3]) * ah


def _loss_kernel(chan_ref, labf_ref, labm_ref, out_ref, *,
                 coord_scale, class_scale, n_classes, tile_r):
    # bf16 mask planes (values 0/1/5/class-idx/-1 are exact in bf16) -> f32
    cm = labm_ref[0].astype(jnp.float32)        # coord_mask (0/1)
    conf_m = labm_ref[1].astype(jnp.float32)    # conf_mask  (0, noobj, obj)
    tcls_enc = labm_ref[2].astype(jnp.float32)  # class idx, -1 where unmasked/pad
    cls_m = (tcls_enc >= 0.0).astype(jnp.float32)   # == cls_mask == lr_mask

    tx = labf_ref[0]
    ty = labf_ref[1]
    tw = labf_ref[2]
    th = labf_ref[3]
    tconf = labf_ref[4]
    tconf_lr = labf_ref[5]

    # raw network channels; sigmoids recomputed here (idle EUP slot) instead of
    # round-tripping extra planes through HBM from kernel 1.
    sx = _sigmoid(chan_ref[0])
    sy = _sigmoid(chan_ref[1])
    wr = chan_ref[2]
    hr = chan_ref[3]
    sc = _sigmoid(chan_ref[4])
    sclr = _sigmoid(chan_ref[5 + n_classes])

    # masked-MSE terms with the masks folded algebraically:
    #   (a*m - b*m)^2 == m*(a-b)^2 for 0/1 masks (coord / lr);
    #   the reference multiplies by sqrt(conf_mask) first, so the conf term
    #   folds to conf_mask*(a-b)^2 as well.
    contrib = (0.5 * coord_scale) * cm * (
        (sx - tx) ** 2 + (sy - ty) ** 2 + (wr - tw) ** 2 + (hr - th) ** 2)
    contrib = contrib + 0.5 * conf_m * (sc - tconf) ** 2
    contrib = contrib + 0.25 * cls_m * (sclr - tconf_lr) ** 2  # 0.5*(MSE/2), lr_mask==cls_mask

    # masked cross-entropy (sum reduction); class planes are re-indexed from
    # VMEM in each pass (vld slots are free) instead of held live -> no spills.
    mx = chan_ref[5]
    for c in range(1, n_classes):
        mx = jnp.maximum(mx, chan_ref[5 + c])
    sexp = jnp.zeros_like(mx)
    tgt = jnp.zeros_like(mx)
    for c in range(n_classes):
        lc = chan_ref[5 + c]
        sexp = sexp + jnp.exp(lc - mx)
        tgt = tgt + jnp.where(tcls_enc == float(c), lc, 0.0)
    contrib = contrib + class_scale * cls_m * (mx + jnp.log(sexp) - tgt)

    # per-tile (8,128) partial via a pure-VPU sublane vadd tree (no XLU reduce,
    # no serial accumulator): each grid step owns its own output block, so the
    # grid axis is fully parallel (both TensorCores on v7x).
    out_ref[0] = contrib.reshape(tile_r // 8, 8, 128).sum(axis=0)


# ----------------------------------------------------------------------------
# Module wrapper
# ----------------------------------------------------------------------------
class LossV2:
    def __init__(self, num_classes=2, anchors=(), num_anchors=5):
        self.num_classes = num_classes
        self.anchors = list(anchors)
        self.num_anchors = num_anchors
        self.anchor_step = int(len(self.anchors) / num_anchors)
        self.coord_scale = 1.0
        self.noobject_scale = 1.0
        self.object_scale = 5.0
        self.class_scale = 1.0
        self.thresh = 0.6

    @staticmethod
    def _vmem_bytes(bytes_per_cell, tile_r):
        # double-buffered blocks + headroom; stay within the 64 MiB v7x VMEM.
        est = bytes_per_cell * tile_r * 128 * 2 + (8 << 20)
        return int(min(max(est, 16 << 20), 48 << 20))

    def __call__(self, output, target):
        nB, _, nH, nW = output.shape
        nA, nC = self.num_anchors, self.num_classes
        nCh = 5 + nC + 1
        N = nB * nA * nH * nW

        # lane-dense padded layout: flat (b, a, h, w) order -> (R, 128) planes.
        # grid_r chosen first so per-tile padding stays < 16 rows (no slab blow-up);
        # tile_r is a multiple of 16 so the bf16 mask slab tiles natively.
        r_min = _cdiv(N, 128)
        grid_r = _cdiv(r_min, 512)
        tile_r = _cdiv(_cdiv(r_min, grid_r), 16) * 16
        R = grid_r * tile_r
        Np = R * 128
        # TODO(synk): for Np >= 2^24 switch the in-kernel geometry to int32
        # div/mod (or pass geometry planes); f32 flat indices lose exactness.
        assert Np < (1 << 24), "flat f32 index trick requires Np < 2^24"

        # single fused channel-major transpose + pad -> the ONLY full slab.
        outf = jnp.asarray(output, jnp.float32).reshape(nB, nA, nCh, nH, nW)
        chan = jnp.transpose(outf, (2, 0, 1, 3, 4)).reshape(nCh, N)
        chan = jnp.pad(chan, ((0, 0), (0, Np - N))).reshape(nCh, R, 128)

        anchor_w = tuple(float(self.anchors[self.anchor_step * n]) for n in range(nA))
        anchor_h = tuple(float(self.anchors[self.anchor_step * n + 1]) for n in range(nA))

        # ---- kernel 1: pred-box decode (reads only the 4 x/y/w/h planes) ----
        pred_kernel = functools.partial(
            _pred_kernel, tile_r=tile_r, n_w=nW, n_h=nH, n_a=nA,
            anchor_w=anchor_w, anchor_h=anchor_h)
        pb = pl.pallas_call(
            pred_kernel,
            out_shape=jax.ShapeDtypeStruct((4, R, 128), jnp.float32),
            grid=(grid_r,),
            in_specs=[pl.BlockSpec((4, tile_r, 128), lambda i: (0, i, 0))],
            out_specs=pl.BlockSpec((4, tile_r, 128), lambda i: (0, i, 0)),
            compiler_params=pltpu.CompilerParams(
                dimension_semantics=("parallel",),
                vmem_limit_bytes=self._vmem_bytes(8 * 4, tile_r)),
            cost_estimate=pl.CostEstimate(
                flops=40 * Np, transcendentals=4 * Np, bytes_accessed=8 * Np * 4),
        )(chan)

        # one blocking D2H copy; ground-truth assignment is inherently serial and
        # data-dependent, so it runs on the host like the reference (convert2cpu).
        pb_host = np.ascontiguousarray(
            np.asarray(jax.device_get(pb)).reshape(4, Np)[:, :N].T)   # (N, 4)
        target_np = np.asarray(target, np.float32)
        (nGT, nCorrect, coord_mask, conf_mask, cls_mask_raw, tx, ty, tw, th,
         tconf, tcls, lr_mask, tconf_lr) = build_label_np(
            pb_host, target_np, self.anchors, nA, nH, nW,
            self.noobject_scale, self.object_scale, self.thresh)
        # nProposals / nGT / nCorrect are diagnostics only in the reference.

        # label packing: 6 f32 target planes + 3 bf16 mask planes.
        # lr_mask is identical to cls_mask (dropped); cls_mask+tcls fuse into
        # tcls_enc (-1 = unmasked).  Padding keeps every mask "off".
        labf = np.zeros((6, Np), np.float32)
        for k, arr in enumerate((tx, ty, tw, th, tconf, tconf_lr)):
            labf[k, :N] = arr.reshape(-1)
        labm = np.zeros((3, Np), np.float32)
        labm[2, :] = -1.0                              # pad cells must stay unmasked
        labm[0, :N] = coord_mask.reshape(-1)           # 0/1
        labm[1, :N] = conf_mask.reshape(-1)            # {0, 1, 5}: exact in bf16
        labm[2, :N] = np.where(cls_mask_raw == 1, tcls, -1.0).reshape(-1)
        labf_dev = jnp.asarray(labf.reshape(6, R, 128))
        labm_dev = jnp.asarray(labm.reshape(3, R, 128).astype(jnp.bfloat16))

        # ---- kernel 2: fused masked loss, parallel per-tile partials --------
        loss_kernel = functools.partial(
            _loss_kernel,
            coord_scale=float(self.coord_scale),
            class_scale=float(self.class_scale),
            n_classes=nC,
            tile_r=tile_r)
        bytes_per_cell = nCh * 4 + 6 * 4 + 3 * 2
        partials = pl.pallas_call(
            loss_kernel,
            out_shape=jax.ShapeDtypeStruct((grid_r, 8, 128), jnp.float32),
            grid=(grid_r,),
            in_specs=[pl.BlockSpec((nCh, tile_r, 128), lambda i: (0, i, 0)),
                      pl.BlockSpec((6, tile_r, 128), lambda i: (0, i, 0)),
                      pl.BlockSpec((3, tile_r, 128), lambda i: (0, i, 0))],
            out_specs=pl.BlockSpec((1, 8, 128), lambda i: (i, 0, 0)),
            compiler_params=pltpu.CompilerParams(
                dimension_semantics=("parallel",),
                vmem_limit_bytes=self._vmem_bytes(bytes_per_cell, tile_r)),
            cost_estimate=pl.CostEstimate(
                flops=(30 + 6 * nC) * Np, transcendentals=(5 + nC) * Np,
                bytes_accessed=bytes_per_cell * Np),
        )(chan, labf_dev, labm_dev)

        # tiny (grid_r*8*128) final reduction + /nB in XLA.
        return jnp.sum(partials) / float(nB)


if __name__ == "__main__":
    key = jax.random.PRNGKey(0)
    nB, nH, nW = 2, 16, 16
    nC, nA = 2, 5
    anchors = [1.3221, 1.73145, 3.19275, 4.00944, 5.05587,
               8.09892, 9.47112, 4.84053, 11.2364, 10.0071]
    out_ch = nA * (5 + nC + 1)
    output = 0.5 * jax.random.normal(key, (nB, out_ch, nH, nW), jnp.float32)

    # target layout per slot of 6: [cls, x, y, w, h, lr]; x == 0 terminates.
    target = np.zeros((nB, 50 * 6), np.float32)
    target[0, 0:6] = [1.0, 0.30, 0.40, 0.20, 0.30, 0.70]
    target[0, 6:12] = [0.0, 0.60, 0.70, 0.15, 0.25, 0.20]
    target[1, 0:6] = [1.0, 0.50, 0.50, 0.40, 0.40, 0.90]

    module = LossV2(num_classes=nC, anchors=anchors, num_anchors=nA)
    loss = module(output, jnp.asarray(target))
    loss = jax.block_until_ready(loss)
    assert np.isfinite(float(loss))
    print("KERNEL_OK")
</pallas_src>

<mosaic_0001>
module attributes {stable_mosaic.version = 11 : i64} {
  func.func @_pred_kernel(%arg0: i32, %arg1: memref<4x32x128xf32, #tpu.memory_space<vmem>>, %arg2: memref<4x32x128xf32, #tpu.memory_space<vmem>>) attributes {dimension_semantics = [#tpu.dimension_semantics<parallel>], iteration_bounds = array<i64: 1>, scalar_prefetch = 0 : i64, scratch_operands = 0 : i64, tpu.core_type = #tpu.core_type<tc>, window_params = [{transform_indices = @transform_0, window_bounds = array<i64: 4, 32, 128>}, {transform_indices = @transform_1, window_bounds = array<i64: 4, 32, 128>}]} {
    %c4096_i32 = arith.constant 4096 : i32
    %0 = arith.muli %arg0, %c4096_i32 : i32
    %1 = tpu.iota {dimensions = array<i32: 0>} : vector<32x128xi32>
    %2 = tpu.iota {dimensions = array<i32: 1>} : vector<32x128xi32>
    %c128_i32 = arith.constant 128 : i32
    %3 = vector.broadcast %c128_i32 : i32 to vector<32x128xi32>
    %4 = arith.muli %1, %3 : vector<32x128xi32>
    %5 = vector.broadcast %0 : i32 to vector<32x128xi32>
    %6 = arith.addi %5, %4 : vector<32x128xi32>
    %7 = arith.addi %6, %2 : vector<32x128xi32>
    %8 = arith.sitofp %7 : vector<32x128xi32> to vector<32x128xf32>
    %cst = arith.constant 1.600000e+01 : f32
    %9 = vector.broadcast %cst : f32 to vector<32x128xf32>
    %10 = arith.divf %8, %9 : vector<32x128xf32>
    %11 = math.floor %10 : vector<32x128xf32>
    %cst_0 = arith.constant 1.600000e+01 : f32
    %12 = vector.broadcast %cst_0 : f32 to vector<32x128xf32>
    %13 = arith.mulf %11, %12 : vector<32x128xf32>
    %14 = arith.subf %8, %13 : vector<32x128xf32>
    %cst_1 = arith.constant 0.000000e+00 : f32
    %15 = vector.broadcast %cst_1 : f32 to vector<32x128xf32>
    %16 = arith.cmpf olt, %14, %15 : vector<32x128xf32>
    %cst_2 = arith.constant 1.000000e+00 : f32
    %17 = vector.broadcast %cst_2 : f32 to vector<32x128xf32>
    %18 = arith.subf %11, %17 : vector<32x128xf32>
    %19 = arith.select %16, %18, %11 : vector<32x128xi1>, vector<32x128xf32>
    %cst_3 = arith.constant 1.600000e+01 : f32
    %20 = vector.broadcast %cst_3 : f32 to vector<32x128xf32>
    %21 = arith.addf %14, %20 : vector<32x128xf32>
    %22 = arith.select %16, %21, %14 : vector<32x128xi1>, vector<32x128xf32>
    %cst_4 = arith.constant 1.600000e+01 : f32
    %23 = vector.broadcast %cst_4 : f32 to vector<32x128xf32>
    %24 = arith.cmpf oge, %22, %23 : vector<32x128xf32>
    %cst_5 = arith.constant 1.000000e+00 : f32
    %25 = vector.broadcast %cst_5 : f32 to vector<32x128xf32>
    %26 = arith.addf %19, %25 : vector<32x128xf32>
    %27 = arith.select %24, %26, %19 : vector<32x128xi1>, vector<32x128xf32>
    %cst_6 = arith.constant 1.600000e+01 : f32
    %28 = vector.broadcast %cst_6 : f32 to vector<32x128xf32>
    %29 = arith.subf %22, %28 : vector<32x128xf32>
    %30 = arith.select %24, %29, %22 : vector<32x128xi1>, vector<32x128xf32>
    %cst_7 = arith.constant 1.600000e+01 : f32
    %31 = vector.broadcast %cst_7 : f32 to vector<32x128xf32>
    %32 = arith.divf %27, %31 : vector<32x128xf32>
    %33 = math.floor %32 : vector<32x128xf32>
    %cst_8 = arith.constant 1.600000e+01 : f32
    %34 = vector.broadcast %cst_8 : f32 to vector<32x128xf32>
    %35 = arith.mulf %33, %34 : vector<32x128xf32>
    %36 = arith.subf %27, %35 : vector<32x128xf32>
    %cst_9 = arith.constant 0.000000e+00 : f32
    %37 = vector.broadcast %cst_9 : f32 to vector<32x128xf32>
    %38 = arith.cmpf olt, %36, %37 : vector<32x128xf32>
    %cst_10 = arith.constant 1.000000e+00 : f32
    %39 = vector.broadcast %cst_10 : f32 to vector<32x128xf32>
    %40 = arith.subf %33, %39 : vector<32x128xf32>
    %41 = arith.select %38, %40, %33 : vector<32x128xi1>, vector<32x128xf32>
    %cst_11 = arith.constant 1.600000e+01 : f32
    %42 = vector.broadcast %cst_11 : f32 to vector<32x128xf32>
    %43 = arith.addf %36, %42 : vector<32x128xf32>
    %44 = arith.select %38, %43, %36 : vector<32x128xi1>, vector<32x128xf32>
    %cst_12 = arith.constant 1.600000e+01 : f32
    %45 = vector.broadcast %cst_12 : f32 to vector<32x128xf32>
    %46 = arith.cmpf oge, %44, %45 : vector<32x128xf32>
    %cst_13 = arith.constant 1.000000e+00 : f32
    %47 = vector.broadcast %cst_13 : f32 to vector<32x128xf32>
    %48 = arith.addf %41, %47 : vector<32x128xf32>
    %49 = arith.select %46, %48, %41 : vector<32x128xi1>, vector<32x128xf32>
    %cst_14 = arith.constant 1.600000e+01 : f32
    %50 = vector.broadcast %cst_14 : f32 to vector<32x128xf32>
    %51 = arith.subf %44, %50 : vector<32x128xf32>
    %52 = arith.select %46, %51, %44 : vector<32x128xi1>, vector<32x128xf32>
    %cst_15 = arith.constant 5.000000e+00 : f32
    %53 = vector.broadcast %cst_15 : f32 to vector<32x128xf32>
    %54 = arith.divf %49, %53 : vector<32x128xf32>
    %55 = math.floor %54 : vector<32x128xf32>
    %cst_16 = arith.constant 5.000000e+00 : f32
    %56 = vector.broadcast %cst_16 : f32 to vector<32x128xf32>
    %57 = arith.mulf %55, %56 : vector<32x128xf32>
    %58 = arith.subf %49, %57 : vector<32x128xf32>
    %cst_17 = arith.constant 0.000000e+00 : f32
    %59 = vector.broadcast %cst_17 : f32 to vector<32x128xf32>
    %60 = arith.cmpf olt, %58, %59 : vector<32x128xf32>
    %cst_18 = arith.constant 5.000000e+00 : f32
    %61 = vector.broadcast %cst_18 : f32 to vector<32x128xf32>
    %62 = arith.addf %58, %61 : vector<32x128xf32>
    %63 = arith.select %60, %62, %58 : vector<32x128xi1>, vector<32x128xf32>
    %cst_19 = arith.constant 5.000000e+00 : f32
    %64 = vector.broadcast %cst_19 : f32 to vector<32x128xf32>
    %65 = arith.cmpf oge, %63, %64 : vector<32x128xf32>
    %cst_20 = arith.constant 5.000000e+00 : f32
    %66 = vector.broadcast %cst_20 : f32 to vector<32x128xf32>
    %67 = arith.subf %63, %66 : vector<32x128xf32>
    %68 = arith.select %65, %67, %63 : vector<32x128xi1>, vector<32x128xf32>
    %cst_21 = arith.constant 0.000000e+00 : f32
    %69 = vector.broadcast %cst_21 : f32 to vector<32x128xf32>
    %cst_22 = arith.constant 0.000000e+00 : f32
    %70 = vector.broadcast %cst_22 : f32 to vector<32x128xf32>
    %cst_23 = arith.constant 0.000000e+00 : f32
    %71 = vector.broadcast %cst_23 : f32 to vector<32x128xf32>
    %72 = arith.cmpf oeq, %68, %71 : vector<32x128xf32>
    %cst_24 = arith.constant 1.322100e+00 : f32
    %73 = vector.broadcast %cst_24 : f32 to vector<32x128xf32>
    %74 = arith.select %72, %73, %69 : vector<32x128xi1>, vector<32x128xf32>
    %cst_25 = arith.constant 1.731450e+00 : f32
    %75 = vector.broadcast %cst_25 : f32 to vector<32x128xf32>
    %76 = arith.select %72, %75, %70 : vector<32x128xi1>, vector<32x128xf32>
    %cst_26 = arith.constant 1.000000e+00 : f32
    %77 = vector.broadcast %cst_26 : f32 to vector<32x128xf32>
    %78 = arith.cmpf oeq, %68, %77 : vector<32x128xf32>
    %cst_27 = arith.constant 3.192750e+00 : f32
    %79 = vector.broadcast %cst_27 : f32 to vector<32x128xf32>
    %80 = arith.select %78, %79, %74 : vector<32x128xi1>, vector<32x128xf32>
    %cst_28 = arith.constant 4.009440e+00 : f32
    %81 = vector.broadcast %cst_28 : f32 to vector<32x128xf32>
    %82 = arith.select %78, %81, %76 : vector<32x128xi1>, vector<32x128xf32>
    %cst_29 = arith.constant 2.000000e+00 : f32
    %83 = vector.broadcast %cst_29 : f32 to vector<32x128xf32>
    %84 = arith.cmpf oeq, %68, %83 : vector<32x128xf32>
    %cst_30 = arith.constant 5.055870e+00 : f32
    %85 = vector.broadcast %cst_30 : f32 to vector<32x128xf32>
    %86 = arith.select %84, %85, %80 : vector<32x128xi1>, vector<32x128xf32>
    %cst_31 = arith.constant 8.09891986 : f32
    %87 = vector.broadcast %cst_31 : f32 to vector<32x128xf32>
    %88 = arith.select %84, %87, %82 : vector<32x128xi1>, vector<32x128xf32>
    %cst_32 = arith.constant 3.000000e+00 : f32
    %89 = vector.broadcast %cst_32 : f32 to vector<32x128xf32>
    %90 = arith.cmpf oeq, %68, %89 : vector<32x128xf32>
    %cst_33 = arith.constant 9.47111988 : f32
    %91 = vector.broadcast %cst_33 : f32 to vector<32x128xf32>
    %92 = arith.select %90, %91, %86 : vector<32x128xi1>, vector<32x128xf32>
    %cst_34 = arith.constant 4.840530e+00 : f32
    %93 = vector.broadcast %cst_34 : f32 to vector<32x128xf32>
    %94 = arith.select %90, %93, %88 : vector<32x128xi1>, vector<32x128xf32>
    %cst_35 = arith.constant 4.000000e+00 : f32
    %95 = vector.broadcast %cst_35 : f32 to vector<32x128xf32>
    %96 = arith.cmpf oeq, %68, %95 : vector<32x128xf32>
    %cst_36 = arith.constant 1.123640e+01 : f32
    %97 = vector.broadcast %cst_36 : f32 to vector<32x128xf32>
    %98 = arith.select %96, %97, %92 : vector<32x128xi1>, vector<32x128xf32>
    %cst_37 = arith.constant 1.000710e+01 : f32
    %99 = vector.broadcast %cst_37 : f32 to vector<32x128xf32>
    %100 = arith.select %96, %99, %94 : vector<32x128xi1>, vector<32x128xf32>
    %c0 = arith.constant 0 : index
    %c0_38 = arith.constant 0 : index
    %c0_39 = arith.constant 0 : index
    %101 = vector.load %arg1[%c0, %c0_38, %c0_39] : memref<4x32x128xf32, #tpu.memory_space<vmem>>, vector<1x32x128xf32>
    %102 = vector.shape_cast %101 : vector<1x32x128xf32> to vector<32x128xf32>
    %cst_40 = arith.constant 5.000000e-01 : f32
    %103 = vector.broadcast %cst_40 : f32 to vector<32x128xf32>
    %104 = arith.mulf %103, %102 : vector<32x128xf32>
    %105 = math.tanh %104 : vector<32x128xf32>
    %cst_41 = arith.constant 1.000000e+00 : f32
    %106 = vector.broadcast %cst_41 : f32 to vector<32x128xf32>
    %107 = arith.addf %105, %106 : vector<32x128xf32>
    %cst_42 = arith.constant 5.000000e-01 : f32
    %108 = vector.broadcast %cst_42 : f32 to vector<32x128xf32>
    %109 = arith.mulf %108, %107 : vector<32x128xf32>
    %110 = arith.addf %109, %30 : vector<32x128xf32>
    %c0_43 = arith.constant 0 : index
    %c0_44 = arith.constant 0 : index
    %c0_45 = arith.constant 0 : index
    %111 = vector.load %arg2[%c0_43, %c0_44, %c0_45] : memref<4x32x128xf32, #tpu.memory_space<vmem>>, vector<1x32x128xf32>
    %112 = vector.shape_cast %111 : vector<1x32x128xf32> to vector<32x128xf32>
    %113 = vector.shape_cast %110 : vector<32x128xf32> to vector<1x32x128xf32>
    tpu.vector_store %arg2[%c0_43, %c0_44, %c0_45], %113 {strides = array<i32>} : memref<4x32x128xf32, #tpu.memory_space<vmem>>, vector<1x32x128xf32>,
    %c1 = arith.constant 1 : index
    %c0_46 = arith.constant 0 : index
    %c0_47 = arith.constant 0 : index
    %114 = vector.load %arg1[%c1, %c0_46, %c0_47] : memref<4x32x128xf32, #tpu.memory_space<vmem>>, vector<1x32x128xf32>
    %115 = vector.shape_cast %114 : vector<1x32x128xf32> to vector<32x128xf32>
    %cst_48 = arith.constant 5.000000e-01 : f32
    %116 = vector.broadcast %cst_48 : f32 to vector<32x128xf32>
    %117 = arith.mulf %116, %115 : vector<32x128xf32>
    %118 = math.tanh %117 : vector<32x128xf32>
    %cst_49 = arith.constant 1.000000e+00 : f32
    %119 = vector.broadcast %cst_49 : f32 to vector<32x128xf32>
    %120 = arith.addf %118, %119 : vector<32x128xf32>
    %cst_50 = arith.constant 5.000000e-01 : f32
    %121 = vector.broadcast %cst_50 : f32 to vector<32x128xf32>
    %122 = arith.mulf %121, %120 : vector<32x128xf32>
    %123 = arith.addf %122, %52 : vector<32x128xf32>
    %c1_51 = arith.constant 1 : index
    %c0_52 = arith.constant 0 : index
    %c0_53 = arith.constant 0 : index
    %124 = vector.load %arg2[%c1_51, %c0_52, %c0_53] : memref<4x32x128xf32, #tpu.memory_space<vmem>>, vector<1x32x128xf32>
    %125 = vector.shape_cast %124 : vector<1x32x128xf32> to vector<32x128xf32>
    %126 = vector.shape_cast %123 : vector<32x128xf32> to vector<1x32x128xf32>
    tpu.vector_store %arg2[%c1_51, %c0_52, %c0_53], %126 {strides = array<i32>} : memref<4x32x128xf32, #tpu.memory_space<vmem>>, vector<1x32x128xf32>,
    %c2 = arith.constant 2 : index
    %c0_54 = arith.constant 0 : index
    %c0_55 = arith.constant 0 : index
    %127 = vector.load %arg1[%c2, %c0_54, %c0_55] : memref<4x32x128xf32, #tpu.memory_space<vmem>>, vector<1x32x128xf32>
    %128 = vector.shape_cast %127 : vector<1x32x128xf32> to vector<32x128xf32>
    %129 = math.exp %128 : vector<32x128xf32>
    %130 = arith.mulf %129, %98 : vector<32x128xf32>
    %c2_56 = arith.constant 2 : index
    %c0_57 = arith.constant 0 : index
    %c0_58 = arith.constant 0 : index
    %131 = vector.load %arg2[%c2_56, %c0_57, %c0_58] : memref<4x32x128xf32, #tpu.memory_space<vmem>>, vector<1x32x128xf32>
    %132 = vector.shape_cast %131 : vector<1x32x128xf32> to vector<32x128xf32>
    %133 = vector.shape_cast %130 : vector<32x128xf32> to vector<1x32x128xf32>
    tpu.vector_store %arg2[%c2_56, %c0_57, %c0_58], %133 {strides = array<i32>} : memref<4x32x128xf32, #tpu.memory_space<vmem>>, vector<1x32x128xf32>,
    %c3 = arith.constant 3 : index
    %c0_59 = arith.constant 0 : index
    %c0_60 = arith.constant 0 : index
    %134 = vector.load %arg1[%c3, %c0_59, %c0_60] : memref<4x32x128xf32, #tpu.memory_space<vmem>>, vector<1x32x128xf32>
    %135 = vector.shape_cast %134 : vector<1x32x128xf32> to vector<32x128xf32>
    %136 = math.exp %135 : vector<32x128xf32>
    %137 = arith.mulf %136, %100 : vector<32x128xf32>
    %c3_61 = arith.constant 3 : index
    %c0_62 = arith.constant 0 : index
    %c0_63 = arith.constant 0 : index
    %138 = vector.load %arg2[%c3_61, %c0_62, %c0_63] : memref<4x32x128xf32, #tpu.memory_space<vmem>>, vector<1x32x128xf32>
    %139 = vector.shape_cast %138 : vector<1x32x128xf32> to vector<32x128xf32>
    %140 = vector.shape_cast %137 : vector<32x128xf32> to vector<1x32x128xf32>
    tpu.vector_store %arg2[%c3_61, %c0_62, %c0_63], %140 {strides = array<i32>} : memref<4x32x128xf32, #tpu.memory_space<vmem>>, vector<1x32x128xf32>,
    return
  }
  func.func @transform_0(%arg0: i32) -> (i32, i32, i32) {
    %c0_i32 = arith.constant 0 : i32
    %c0_i32_0 = arith.constant 0 : i32
    %c0_i32_1 = arith.constant 0 : i32
    return %c0_i32, %arg0, %c0_i32_0 : i32, i32, i32
  }
  func.func @transform_1(%arg0: i32) -> (i32, i32, i32) {
    %c0_i32 = arith.constant 0 : i32
    %c0_i32_0 = arith.constant 0 : i32
    %c0_i32_1 = arith.constant 0 : i32
    return %c0_i32, %arg0, %c0_i32_0 : i32, i32, i32
  }
}

</mosaic_0001>

<llo_original>
// kernel: tpu_custom_call.1
$region0: #{tpu_custom_call.1}
  #allocation0 [shape = 'u32[]', space=smem, size = 0x4, offset = 0x4, fixed_abs, tag = 'smem constant byte address 0x4 - core index']
  #allocation1 [shape = 'u32[144,128]{1,0:T(1,128)}', space=vmem, size = 0x12000, scoped, tag = 'internal scratch']
  %s0 = inlined_call_operand.hbm [shape: f32[8,32,128], index: 0, kind: input, shape index: {}]
  %s1 = inlined_call_operand.hbm [shape: f32[4,32,128], index: 1, kind: output, shape index: {}]
  %s2 = sld [smem:[#allocation0]]
  $region18: #{tpu_custom_call.1} parent=0
    _
  %s4 = ssub.s32 1, %s2
  %s5 = scalar_select 0, %s4, %s2
  $region1: #{tpu_custom_call.1} parent=0
    #allocation2 [shape = 'u8[65536]{0}', space=vmem, size = 0x10000, scoped, tag = 'input window, operand 0, single buffered']
    #allocation3 [shape = 's32[1]{0}', space=sflag, size = 0x4, scoped, tag = 'scoped memory for tpu_custom_call.1']
    #allocation4 [shape = 's32[1]{0}', space=sflag, size = 0x4, scoped, tag = 'scoped memory for tpu_custom_call.1']
    #allocation5 [shape = 'u8[65536]{0}', space=vmem, size = 0x10000, scoped, tag = 'output window, operand 0, single buffered']
    %6 = vsyncpa [#allocation3], 0
    %7 = vsyncpa [#allocation4], 0
    // Predicated region
    $region2: #{tpu_custom_call.1} parent=1 // pred_check
      _
    $region3: #{tpu_custom_call.1} parent=1 // pred_check_branch
      %9 = sbr.rel (0) target = $region5
    $region4: #{tpu_custom_call.1} parent=1 // pred_region
      %s11 = ssub.s32 2048, 2048
      %12 = vsyncadd [#allocation3], %s11
      %s13 = sshll.u32 [#allocation2], 4
      %s14 = int_to_ptr.vmem [resolvable:$true] %s13
      %19 = dma.hbm_to_vmem [thread:$0]  %s0, 2048, %s14, [#allocation3], 128, 128, 8
    $region5: #{tpu_custom_call.1} parent=1 // pred_fallthru
      _
    // Predicated region
    $region6: #{tpu_custom_call.1} parent=1 // pred_check
      _
    $region7: #{tpu_custom_call.1} parent=1 // pred_check_branch
      %21 = sbr.rel (0) target = $region9
    $region8: #{tpu_custom_call.1} parent=1 // pred_region
      %22 = dma.done [#allocation3], 2048
    $region9: #{tpu_custom_call.1} parent=1 // pred_fallthru
      _
    %s23 = smul.u32 0, 4096
    %v24 = vlaneseq
    %v25 = vshrl.u32 %v24, 7
    %v26 = vadd.s32 %v25, 8
    %v27 = vadd.s32 %v25, 16
    %v28 = vadd.s32 %v25, 24
    %v29 = vlaneseq
    %v30 = vand.u32 %v29, 127
    %v31 = vmul.u32 %v25, 128
    %v32 = vmul.u32 %v26, 128
    %v33 = vmul.u32 %v27, 128
    %v34 = vmul.u32 %v28, 128
    %v35 = vstv %s23
    %v36 = vadd.s32 %v35, %v31
    %v37 = vadd.s32 %v35, %v32
    %v38 = vadd.s32 %v35, %v33
    %v39 = vadd.s32 %v35, %v34
    %v40 = vadd.s32 %v36, %v30
    %v41 = vadd.s32 %v37, %v30
    %v42 = vadd.s32 %v38, %v30
    %v43 = vadd.s32 %v39, %v30
    %v44 = vcvt.s32.f32 %v40
    %v45 = vcvt.s32.f32 %v41
    %v46 = vcvt.s32.f32 %v42
    %v47 = vcvt.s32.f32 %v43
    %v48 = vrcp.pop 16.0
    %v49 = vmul.f32 %v44, %v48
    %v50 = vmul.f32 %v45, %v48
    %v51 = vmul.f32 %v46, %v48
    %v52 = vmul.f32 %v47, %v48
    %v53 = vfloor.f32 %v49
    %v54 = vfloor.f32 %v50
    %v55 = vfloor.f32 %v51
    %v56 = vfloor.f32 %v52
    %v57 = vmul.f32 %v53, 16.0
    %v58 = vmul.f32 %v54, 16.0
    %v59 = vmul.f32 %v55, 16.0
    %v60 = vmul.f32 %v56, 16.0
    %v61 = vsub.f32 %v44, %v57
    %v62 = vsub.f32 %v45, %v58
    %v63 = vsub.f32 %v46, %v59
    %v64 = vsub.f32 %v47, %v60
    %vm65 = vcmp.lt.f32.partialorder %v61, 0.0
    %vm66 = vcmp.lt.f32.partialorder %v62, 0.0
    %vm67 = vcmp.lt.f32.partialorder %v63, 0.0
    %vm68 = vcmp.lt.f32.partialorder %v64, 0.0
    %v69 = vsub.f32 %v53, 1.0
    %v70 = vsub.f32 %v54, 1.0
    %v71 = vsub.f32 %v55, 1.0
    %v72 = vsub.f32 %v56, 1.0
    %v73 = vsel %vm65, %v69, %v53
    %v74 = vsel %vm66, %v70, %v54
    %v75 = vsel %vm67, %v71, %v55
    %v76 = vsel %vm68, %v72, %v56
    %v77 = vadd.f32 %v61, 16.0
    %v78 = vadd.f32 %v62, 16.0
    %v79 = vadd.f32 %v63, 16.0
    %v80 = vadd.f32 %v64, 16.0
    %v81 = vsel %vm65, %v77, %v61
    %v82 = vsel %vm66, %v78, %v62
    %v83 = vsel %vm67, %v79, %v63
    %v84 = vsel %vm68, %v80, %v64
    %vm85 = vcmp.ge.f32.partialorder %v81, 16.0
    %vm86 = vcmp.ge.f32.partialorder %v82, 16.0
    %vm87 = vcmp.ge.f32.partialorder %v83, 16.0
    %vm88 = vcmp.ge.f32.partialorder %v84, 16.0
    %v89 = vadd.f32 %v73, 1.0
    %v90 = vadd.f32 %v74, 1.0
    %v91 = vadd.f32 %v75, 1.0
    %v92 = vadd.f32 %v76, 1.0
    %v93 = vsel %vm85, %v89, %v73
    %v94 = vsel %vm86, %v90, %v74
    %v95 = vsel %vm87, %v91, %v75
    %v96 = vsel %vm88, %v92, %v76
    %v97 = vsub.f32 %v81, 16.0
    %v98 = vsub.f32 %v82, 16.0
    %v99 = vsub.f32 %v83, 16.0
    %v100 = vsub.f32 %v84, 16.0
    %v101 = vsel %vm85, %v97, %v81
    %v102 = vsel %vm86, %v98, %v82
    %v103 = vsel %vm87, %v99, %v83
    %v104 = vsel %vm88, %v100, %v84
    %v105 = vmul.f32 %v93, %v48
    %v106 = vmul.f32 %v94, %v48
    %v107 = vmul.f32 %v95, %v48
    %v108 = vmul.f32 %v96, %v48
    %v109 = vfloor.f32 %v105
    %v110 = vfloor.f32 %v106
    %v111 = vfloor.f32 %v107
    %v112 = vfloor.f32 %v108
    %v113 = vmul.f32 %v109, 16.0
    %v114 = vmul.f32 %v110, 16.0
    %v115 = vmul.f32 %v111, 16.0
    %v116 = vmul.f32 %v112, 16.0
    %v117 = vsub.f32 %v93, %v113
    %v118 = vsub.f32 %v94, %v114
    %v119 = vsub.f32 %v95, %v115
    %v120 = vsub.f32 %v96, %v116
    %vm121 = vcmp.lt.f32.partialorder %v117, 0.0
    %vm122 = vcmp.lt.f32.partialorder %v118, 0.0
    %vm123 = vcmp.lt.f32.partialorder %v119, 0.0
    %vm124 = vcmp.lt.f32.partialorder %v120, 0.0
    %v125 = vsub.f32 %v109, 1.0
    %v126 = vsub.f32 %v110, 1.0
    %v127 = vsub.f32 %v111, 1.0
    %v128 = vsub.f32 %v112, 1.0
    %v129 = vsel %vm121, %v125, %v109
    %v130 = vsel %vm122, %v126, %v110
    %v131 = vsel %vm123, %v127, %v111
    %v132 = vsel %vm124, %v128, %v112
    %v133 = vadd.f32 %v117, 16.0
    %v134 = vadd.f32 %v118, 16.0
    %v135 = vadd.f32 %v119, 16.0
    %v136 = vadd.f32 %v120, 16.0
    %v137 = vsel %vm121, %v133, %v117
    %v138 = vsel %vm122, %v134, %v118
    %v139 = vsel %vm123, %v135, %v119
    %v140 = vsel %vm124, %v136, %v120
    %vm141 = vcmp.ge.f32.partialorder %v137, 16.0
    %vm142 = vcmp.ge.f32.partialorder %v138, 16.0
    %vm143 = vcmp.ge.f32.partialorder %v139, 16.0
    %vm144 = vcmp.ge.f32.partialorder %v140, 16.0
    %v145 = vadd.f32 %v129, 1.0
    %v146 = vadd.f32 %v130, 1.0
    %v147 = vadd.f32 %v131, 1.0
    %v148 = vadd.f32 %v132, 1.0
    %v149 = vsel %vm141, %v145, %v129
    %v150 = vsel %vm142, %v146, %v130
    %v151 = vsel %vm143, %v147, %v131
    %v152 = vsel %vm144, %v148, %v132
    %v153 = vsub.f32 %v137, 16.0
    %v154 = vsub.f32 %v138, 16.0
    %v155 = vsub.f32 %v139, 16.0
    %v156 = vsub.f32 %v140, 16.0
    %v157 = vsel %vm141, %v153, %v137
    %v158 = vsel %vm142, %v154, %v138
    %v159 = vsel %vm143, %v155, %v139
    %v160 = vsel %vm144, %v156, %v140
    %v161 = vrcp.pop 5.0
    %v162 = vmul.f32 %v149, %v161
    %v163 = vmul.f32 %v150, %v161
    %v164 = vmul.f32 %v151, %v161
    %v165 = vmul.f32 %v152, %v161
    %v166 = vfloor.f32 %v162
    %v167 = vfloor.f32 %v163
    %v168 = vfloor.f32 %v164
    %v169 = vfloor.f32 %v165
    %v170 = vmul.f32 %v166, 5.0
    %v171 = vmul.f32 %v167, 5.0
    %v172 = vmul.f32 %v168, 5.0
    %v173 = vmul.f32 %v169, 5.0
    %v174 = vsub.f32 %v149, %v170
    %v175 = vsub.f32 %v150, %v171
    %v176 = vsub.f32 %v151, %v172
    %v177 = vsub.f32 %v152, %v173
    %vm178 = vcmp.lt.f32.partialorder %v174, 0.0
    %vm179 = vcmp.lt.f32.partialorder %v175, 0.0
    %vm180 = vcmp.lt.f32.partialorder %v176, 0.0
    %vm181 = vcmp.lt.f32.partialorder %v177, 0.0
    %v182 = vadd.f32 %v174, 5.0
    %v183 = vadd.f32 %v175, 5.0
    %v184 = vadd.f32 %v176, 5.0
    %v185 = vadd.f32 %v177, 5.0
    %v186 = vsel %vm178, %v182, %v174
    %v187 = vsel %vm179, %v183, %v175
    %v188 = vsel %vm180, %v184, %v176
    %v189 = vsel %vm181, %v185, %v177
    %vm190 = vcmp.ge.f32.partialorder %v186, 5.0
    %vm191 = vcmp.ge.f32.partialorder %v187, 5.0
    %vm192 = vcmp.ge.f32.partialorder %v188, 5.0
    %vm193 = vcmp.ge.f32.partialorder %v189, 5.0
    %v194 = vsub.f32 %v186, 5.0
    %v195 = vsub.f32 %v187, 5.0
    %v196 = vsub.f32 %v188, 5.0
    %v197 = vsub.f32 %v189, 5.0
    %v198 = vsel %vm190, %v194, %v186
    %v199 = vsel %vm191, %v195, %v187
    %v200 = vsel %vm192, %v196, %v188
    %v201 = vsel %vm193, %v197, %v189
    %vm202 = vcmp.eq.f32.partialorder %v198, 0.0
    %vm203 = vcmp.eq.f32.partialorder %v199, 0.0
    %vm204 = vcmp.eq.f32.partialorder %v200, 0.0
    %vm205 = vcmp.eq.f32.partialorder %v201, 0.0
    %v206 = vsel %vm202, 1.3221, 0.0
    %v207 = vsel %vm203, 1.3221, 0.0
    %v208 = vsel %vm204, 1.3221, 0.0
    %v209 = vsel %vm205, 1.3221, 0.0
    %v210 = vsel %vm202, 1.73145, 0.0
    %v211 = vsel %vm203, 1.73145, 0.0
    %v212 = vsel %vm204, 1.73145, 0.0
    %v213 = vsel %vm205, 1.73145, 0.0
    %vm214 = vcmp.eq.f32.partialorder %v198, 1.0
    %vm215 = vcmp.eq.f32.partialorder %v199, 1.0
    %vm216 = vcmp.eq.f32.partialorder %v200, 1.0
    %vm217 = vcmp.eq.f32.partialorder %v201, 1.0
    %v218 = vsel %vm214, 3.19275, %v206
    %v219 = vsel %vm215, 3.19275, %v207
    %v220 = vsel %vm216, 3.19275, %v208
    %v221 = vsel %vm217, 3.19275, %v209
    %v222 = vsel %vm214, 4.00944, %v210
    %v223 = vsel %vm215, 4.00944, %v211
    %v224 = vsel %vm216, 4.00944, %v212
    %v225 = vsel %vm217, 4.00944, %v213
    %vm226 = vcmp.eq.f32.partialorder %v198, 2.0
    %vm227 = vcmp.eq.f32.partialorder %v199, 2.0
    %vm228 = vcmp.eq.f32.partialorder %v200, 2.0
    %vm229 = vcmp.eq.f32.partialorder %v201, 2.0
    %v230 = vsel %vm226, 5.05587, %v218
    %v231 = vsel %vm227, 5.05587, %v219
    %v232 = vsel %vm228, 5.05587, %v220
    %v233 = vsel %vm229, 5.05587, %v221
    %v234 = vsel %vm226, 8.09892, %v222
    %v235 = vsel %vm227, 8.09892, %v223
    %v236 = vsel %vm228, 8.09892, %v224
    %v237 = vsel %vm229, 8.09892, %v225
    %vm238 = vcmp.eq.f32.partialorder %v198, 3.0
    %vm239 = vcmp.eq.f32.partialorder %v199, 3.0
    %vm240 = vcmp.eq.f32.partialorder %v200, 3.0
    %vm241 = vcmp.eq.f32.partialorder %v201, 3.0
    %v242 = vsel %vm238, 9.47112, %v230
    %v243 = vsel %vm239, 9.47112, %v231
    %v244 = vsel %vm240, 9.47112, %v232
    %v245 = vsel %vm241, 9.47112, %v233
    %v246 = vsel %vm238, 4.84053, %v234
    %v247 = vsel %vm239, 4.84053, %v235
    %v248 = vsel %vm240, 4.84053, %v236
    %v249 = vsel %vm241, 4.84053, %v237
    %vm250 = vcmp.eq.f32.partialorder %v198, 4.0
    %vm251 = vcmp.eq.f32.partialorder %v199, 4.0
    %vm252 = vcmp.eq.f32.partialorder %v200, 4.0
    %vm253 = vcmp.eq.f32.partialorder %v201, 4.0
    %v254 = vsel %vm250, 11.2364, %v242
    %v255 = vsel %vm251, 11.2364, %v243
    %v256 = vsel %vm252, 11.2364, %v244
    %v257 = vsel %vm253, 11.2364, %v245
    %v258 = vsel %vm250, 10.0071, %v246
    %v259 = vsel %vm251, 10.0071, %v247
    %v260 = vsel %vm252, 10.0071, %v248
    %v261 = vsel %vm253, 10.0071, %v249
    %v262 = vld [vmem:[#allocation2] sm:$0xff]
    %v263 = vld [vmem:[#allocation2 + $0x8] sm:$0xff]
    %v264 = vld [vmem:[#allocation2 + $0x10] sm:$0xff]
    %v265 = vld [vmem:[#allocation2 + $0x18] sm:$0xff]
    %v266 = vmul.f32 %v262, 0.5
    %v267 = vmul.f32 %v263, 0.5
    %v268 = vmul.f32 %v264, 0.5
    %v269 = vmul.f32 %v265, 0.5
    %v270 = vtanh.pop %v266
    %v271 = vtanh.pop %v267
    %v272 = vtanh.pop %v268
    %v273 = vtanh.pop %v269
    %v274 = vadd.f32 %v270, 1.0
    %v275 = vadd.f32 %v271, 1.0
    %v276 = vadd.f32 %v272, 1.0
    %v277 = vadd.f32 %v273, 1.0
    %v278 = vmul.f32 %v274, 0.5
    %v279 = vmul.f32 %v275, 0.5
    %v280 = vmul.f32 %v276, 0.5
    %v281 = vmul.f32 %v277, 0.5
    %v282 = vadd.f32 %v278, %v101
    %v283 = vadd.f32 %v279, %v102
    %v284 = vadd.f32 %v280, %v103
    %v285 = vadd.f32 %v281, %v104
    %286 = vst [vmem:[#allocation5] sm:$0xff] %v282
    %287 = vst [vmem:[#allocation5 + $0x8] sm:$0xff] %v283
    %288 = vst [vmem:[#allocation5 + $0x10] sm:$0xff] %v284
    %289 = vst [vmem:[#allocation5 + $0x18] sm:$0xff] %v285
    %s290 = scalar_lea.vmem [#allocation2], 32
    %v291 = vld [vmem:[%s290] sm:$0xff]
    %v292 = vld [vmem:[%s290 + $0x8] sm:$0xff]
    %v293 = vld [vmem:[%s290 + $0x10] sm:$0xff]
    %v294 = vld [vmem:[%s290 + $0x18] sm:$0xff]
    %v295 = vmul.f32 %v291, 0.5
    %v296 = vmul.f32 %v292, 0.5
    %v297 = vmul.f32 %v293, 0.5
    %v298 = vmul.f32 %v294, 0.5
    %v299 = vtanh.pop %v295
    %v300 = vtanh.pop %v296
    %v301 = vtanh.pop %v297
    %v302 = vtanh.pop %v298
    %v303 = vadd.f32 %v299, 1.0
    %v304 = vadd.f32 %v300, 1.0
    %v305 = vadd.f32 %v301, 1.0
    %v306 = vadd.f32 %v302, 1.0
    %v307 = vmul.f32 %v303, 0.5
    %v308 = vmul.f32 %v304, 0.5
    %v309 = vmul.f32 %v305, 0.5
    %v310 = vmul.f32 %v306, 0.5
    %v311 = vadd.f32 %v307, %v157
    %v312 = vadd.f32 %v308, %v158
    %v313 = vadd.f32 %v309, %v159
    %v314 = vadd.f32 %v310, %v160
    %s315 = scalar_lea.vmem [#allocation5], 32
    %316 = vst [vmem:[%s315] sm:$0xff] %v311
    %317 = vst [vmem:[%s315 + $0x8] sm:$0xff] %v312
    %318 = vst [vmem:[%s315 + $0x10] sm:$0xff] %v313
    %319 = vst [vmem:[%s315 + $0x18] sm:$0xff] %v314
    %s320 = scalar_lea.vmem [#allocation2], 64
    %v321 = vld [vmem:[%s320] sm:$0xff]
    %v322 = vld [vmem:[%s320 + $0x8] sm:$0xff]
    %v323 = vld [vmem:[%s320 + $0x10] sm:$0xff]
    %v324 = vld [vmem:[%s320 + $0x18] sm:$0xff]
    %v325 = vmul.f32 %v321, 1.442695
    %v326 = vpow.pop %v325
    %v327 = vmul.f32 %v322, 1.442695
    %v328 = vpow.pop %v327
    %v329 = vmul.f32 %v323, 1.442695
    %v330 = vpow.pop %v329
    %v331 = vmul.f32 %v324, 1.442695
    %v332 = vpow.pop %v331
    %v333 = vmul.f32 %v326, %v254
    %v334 = vmul.f32 %v328, %v255
    %v335 = vmul.f32 %v330, %v256
    %v336 = vmul.f32 %v332, %v257
    %s337 = scalar_lea.vmem [#allocation5], 64
    %338 = vst [vmem:[%s337] sm:$0xff] %v333
    %339 = vst [vmem:[%s337 + $0x8] sm:$0xff] %v334
    %340 = vst [vmem:[%s337 + $0x10] sm:$0xff] %v335
    %341 = vst [vmem:[%s337 + $0x18] sm:$0xff] %v336
    %s342 = scalar_lea.vmem [#allocation2], 96
    %v343 = vld [vmem:[%s342] sm:$0xff]
    %v344 = vld [vmem:[%s342 + $0x8] sm:$0xff]
    %v345 = vld [vmem:[%s342 + $0x10] sm:$0xff]
    %v346 = vld [vmem:[%s342 + $0x18] sm:$0xff]
    %v347 = vmul.f32 %v343, 1.442695
    %v348 = vpow.pop %v347
    %v349 = vmul.f32 %v344, 1.442695
    %v350 = vpow.pop %v349
    %v351 = vmul.f32 %v345, 1.442695
    %v352 = vpow.pop %v351
    %v353 = vmul.f32 %v346, 1.442695
    %v354 = vpow.pop %v353
    %v355 = vmul.f32 %v348, %v258
    %v356 = vmul.f32 %v350, %v259
    %v357 = vmul.f32 %v352, %v260
    %v358 = vmul.f32 %v354, %v261
    %s359 = scalar_lea.vmem [#allocation5], 96
    %360 = vst [vmem:[%s359] sm:$0xff] %v355
    %361 = vst [vmem:[%s359 + $0x8] sm:$0xff] %v356
    %362 = vst [vmem:[%s359 + $0x10] sm:$0xff] %v357
    %363 = vst [vmem:[%s359 + $0x18] sm:$0xff] %v358
    // Predicated region
    $region10: #{tpu_custom_call.1} parent=1 // pred_check
      _
    $region11: #{tpu_custom_call.1} parent=1 // pred_check_branch
      %365 = sbr.rel (0) target = $region13
    $region12: #{tpu_custom_call.1} parent=1 // pred_region
      %s367 = ssub.s32 2048, 2048
      %368 = vsyncadd [#allocation4], %s367
      %s369 = sshll.u32 [#allocation5], 4
      %s370 = int_to_ptr.vmem [resolvable:$true] %s369
      %375 = dma.vmem_to_hbm [thread:$0]  %s370, 2048, %s1, [#allocation4], 128, 128, 8
    $region13: #{tpu_custom_call.1} parent=1 // pred_fallthru
      _
    // Predicated region
    $region14: #{tpu_custom_call.1} parent=1 // pred_check
      _
    $region15: #{tpu_custom_call.1} parent=1 // pred_check_branch
      %377 = sbr.rel (0) target = $region17
    $region16: #{tpu_custom_call.1} parent=1 // pred_region
      %378 = dma.done [#allocation4], 2048
    $region17: #{tpu_custom_call.1} parent=1 // pred_fallthru
      _
    %379 = vsyncpa [#allocation3], 1
    %380 = vsyncpa [#allocation4], 1

</llo_original>
